<compile_context>
chip_gen: v7x
topology: tpu7x:2x2x1
jax: 0.10.0
libtpu: 0.0.40
codegen_flags: <defaults>
</compile_context>

<pallas_src>
import jax
import jax.numpy as jnp
from jax.experimental import pallas as pl
from jax.experimental.pallas import tpu as pltpu


def policy_kernel(xt_ref, w1t_ref, b1t_ref, w2t_ref, b2t_ref, out_ref):
    """Transposed-layout forward for one batch tile.

    xt_ref : (S, TB)  states, batch on lanes
    w1t_ref: (H, S)   fc1 weight, transposed
    b1t_ref: (H, 1)   fc1 bias (column)
    w2t_ref: (A, H)   fc2 weight, transposed
    b2t_ref: (A, 1)   fc2 bias (column)
    out_ref: (A, TB)  action probabilities, batch on lanes (lane-dense store)
    """
    xt = xt_ref[...]
    w1t = w1t_ref[...]
    s = xt.shape[0]

    # fc1 (+bias, ReLU) on the VPU: K=S is tiny, keep it off the MXU.
    h = w1t[:, 0:1] * xt[0:1, :]                       # (H, TB)
    for k in range(1, s):                              # unrolled, S is static
        h = h + w1t[:, k:k + 1] * xt[k:k + 1, :]
    h = jnp.maximum(h + b1t_ref[...], 0.0)

    # fc2 on the MXU (K = H = 128), f32 accumulate.
    logits = jnp.dot(w2t_ref[...], h,
                     preferred_element_type=jnp.float32) + b2t_ref[...]  # (A, TB)

    a = logits.shape[0]
    if a == 2:
        # softmax over 2 actions == sigmoid of the logit difference.
        d = logits[1:2, :] - logits[0:1, :]            # (1, TB)
        p1 = pl.reciprocal(1.0 + jnp.exp(-d), approx=True)
        p0 = 1.0 - p1
        probs = jnp.concatenate([p0, p1], axis=0)      # (2, TB)
    else:
        m = jnp.max(logits, axis=0, keepdims=True)
        e = jnp.exp(logits - m)
        probs = e * pl.reciprocal(jnp.sum(e, axis=0, keepdims=True), approx=True)

    out_ref[...] = probs.astype(out_ref.dtype)


def policy_forward(x, w1, b1, w2, b2, *, batch_tile=128):
    """softmax(relu(x @ w1 + b1) @ w2 + b2) via a Pallas TPU kernel.

    x: (B, S)   w1: (S, H)   b1: (1, H)   w2: (H, A)   b2: (1, A)
    Returns (B, A) float32 action probabilities.
    """
    B, S = x.shape
    H = w1.shape[1]
    A = w2.shape[1]

    # Pad batch up to a lane-dense multiple of the tile, compute transposed
    # (batch on lanes), slice + transpose back in the (tiny) wrapper.
    n_tiles = pl.cdiv(B, batch_tile)
    B_pad = n_tiles * batch_tile
    x_t = jnp.pad(x, ((0, B_pad - B), (0, 0))).T       # (S, B_pad)
    w1_t = w1.T                                        # (H, S)
    b1_t = b1.reshape(H, 1)                            # (H, 1)
    w2_t = w2.T                                        # (A, H)
    b2_t = b2.reshape(A, 1)                            # (A, 1)

    cost = pl.CostEstimate(
        flops=2 * B_pad * (S * H + H * A),
        transcendentals=B_pad * A,
        bytes_accessed=4 * (x_t.size + w1_t.size + b1_t.size
                            + w2_t.size + b2_t.size + A * B_pad),
    )
    out_shape = jax.ShapeDtypeStruct((A, B_pad), jnp.float32)

    if n_tiles == 1:
        # Single block: no grid, no pipelining machinery, full-array blocks.
        out_t = pl.pallas_call(
            policy_kernel,
            out_shape=out_shape,
            cost_estimate=cost,
        )(x_t, w1_t, b1_t, w2_t, b2_t)
    else:
        out_t = pl.pallas_call(
            policy_kernel,
            out_shape=out_shape,
            grid=(n_tiles,),
            in_specs=[
                pl.BlockSpec((S, batch_tile), lambda i: (0, i)),   # state tile
                pl.BlockSpec((H, S), lambda i: (0, 0)),            # fc1 weight
                pl.BlockSpec((H, 1), lambda i: (0, 0)),            # fc1 bias
                pl.BlockSpec((A, H), lambda i: (0, 0)),            # fc2 weight
                pl.BlockSpec((A, 1), lambda i: (0, 0)),            # fc2 bias
            ],
            out_specs=pl.BlockSpec((A, batch_tile), lambda i: (0, i)),
            compiler_params=pltpu.CompilerParams(
                dimension_semantics=("parallel",)),    # batch axis -> both TCs
            cost_estimate=cost,
        )(x_t, w1_t, b1_t, w2_t, b2_t)

    return out_t[:, :B].T                              # (B, A)


def init_params(key, state_size, hidden, action_size):
    # Deterministic synthetic init mimicking nn.Linear's U(-1/sqrt(fan_in), 1/sqrt(fan_in)).
    k1, k2, k3, k4 = jax.random.split(key, 4)
    bound1 = 1.0 / jnp.sqrt(state_size)
    bound2 = 1.0 / jnp.sqrt(hidden)
    w1 = jax.random.uniform(k1, (state_size, hidden), jnp.float32, -bound1, bound1)
    b1 = jax.random.uniform(k2, (1, hidden), jnp.float32, -bound1, bound1)
    w2 = jax.random.uniform(k3, (hidden, action_size), jnp.float32, -bound2, bound2)
    b2 = jax.random.uniform(k4, (1, action_size), jnp.float32, -bound2, bound2)
    return w1, b1, w2, b2


if __name__ == "__main__":
    STATE_SIZE = 4     # CartPole-v1 observation dim
    ACTION_SIZE = 2    # CartPole-v1 action dim
    HIDDEN = 128
    BATCH = 256        # batch a whole rollout of states per call (amortize launch/DMA)

    key = jax.random.PRNGKey(0)
    kx, kp = jax.random.split(key)
    x = jax.random.normal(kx, (BATCH, STATE_SIZE), jnp.float32)
    w1, b1, w2, b2 = init_params(kp, STATE_SIZE, HIDDEN, ACTION_SIZE)

    probs = policy_forward(x, w1, b1, w2, b2)
    probs = jax.block_until_ready(probs)

    # Pure-JAX reference check (approx reciprocal -> slightly relaxed tolerance).
    h_ref = jnp.maximum(x @ w1 + b1, 0.0)
    ref = jax.nn.softmax(h_ref @ w2 + b2, axis=-1)
    assert probs.shape == (BATCH, ACTION_SIZE)
    assert jnp.allclose(probs, ref, atol=2e-3), "mismatch vs reference (tiled path)"
    assert jnp.allclose(jnp.sum(probs, axis=-1), 1.0, atol=2e-3)

    # Also exercise the degenerate small-batch (no-grid) path.
    probs_small = jax.block_until_ready(policy_forward(x[:8], w1, b1, w2, b2))
    assert probs_small.shape == (8, ACTION_SIZE)
    assert jnp.allclose(probs_small, ref[:8], atol=2e-3), "mismatch vs reference (no-grid path)"

    print("KERNEL_OK")
</pallas_src>

<mosaic_0001>
module attributes {stable_mosaic.version = 11 : i64} {
  func.func @policy_kernel(%arg0: i32, %arg1: memref<4x128xf32, #tpu.memory_space<vmem>>, %arg2: memref<128x4xf32, #tpu.memory_space<vmem>>, %arg3: memref<128x1xf32, #tpu.memory_space<vmem>>, %arg4: memref<2x128xf32, #tpu.memory_space<vmem>>, %arg5: memref<2x1xf32, #tpu.memory_space<vmem>>, %arg6: memref<2x128xf32, #tpu.memory_space<vmem>>) attributes {dimension_semantics = [#tpu.dimension_semantics<parallel>], iteration_bounds = array<i64: 2>, scalar_prefetch = 0 : i64, scratch_operands = 0 : i64, tpu.core_type = #tpu.core_type<tc>, window_params = [{transform_indices = @transform_0, window_bounds = array<i64: 4, 128>}, {pipeline_mode = #tpu.pipeline_mode<synchronous>, transform_indices = @transform_1, window_bounds = array<i64: 128, 4>}, {pipeline_mode = #tpu.pipeline_mode<synchronous>, transform_indices = @transform_2, window_bounds = array<i64: 128, 1>}, {pipeline_mode = #tpu.pipeline_mode<synchronous>, transform_indices = @transform_3, window_bounds = array<i64: 2, 128>}, {pipeline_mode = #tpu.pipeline_mode<synchronous>, transform_indices = @transform_4, window_bounds = array<i64: 2, 1>}, {transform_indices = @transform_5, window_bounds = array<i64: 2, 128>}]} {
    %c0 = arith.constant 0 : index
    %c0_0 = arith.constant 0 : index
    %0 = vector.load %arg1[%c0, %c0_0] : memref<4x128xf32, #tpu.memory_space<vmem>>, vector<4x128xf32>
    %c0_1 = arith.constant 0 : index
    %c0_2 = arith.constant 0 : index
    %1 = vector.load %arg2[%c0_1, %c0_2] : memref<128x4xf32, #tpu.memory_space<vmem>>, vector<128x4xf32>
    %2 = vector.extract_strided_slice %1 {offsets = [0, 0], sizes = [128, 1], strides = [1, 1]} : vector<128x4xf32> to vector<128x1xf32>
    %3 = vector.extract_strided_slice %0 {offsets = [0, 0], sizes = [1, 128], strides = [1, 1]} : vector<4x128xf32> to vector<1x128xf32>
    %4 = vector.broadcast %2 : vector<128x1xf32> to vector<128x128xf32>
    %5 = vector.broadcast %3 : vector<1x128xf32> to vector<128x128xf32>
    %6 = arith.mulf %4, %5 : vector<128x128xf32>
    %7 = vector.extract_strided_slice %1 {offsets = [0, 1], sizes = [128, 1], strides = [1, 1]} : vector<128x4xf32> to vector<128x1xf32>
    %8 = vector.extract_strided_slice %0 {offsets = [1, 0], sizes = [1, 128], strides = [1, 1]} : vector<4x128xf32> to vector<1x128xf32>
    %9 = vector.broadcast %7 : vector<128x1xf32> to vector<128x128xf32>
    %10 = vector.broadcast %8 : vector<1x128xf32> to vector<128x128xf32>
    %11 = arith.mulf %9, %10 : vector<128x128xf32>
    %12 = arith.addf %6, %11 : vector<128x128xf32>
    %13 = vector.extract_strided_slice %1 {offsets = [0, 2], sizes = [128, 1], strides = [1, 1]} : vector<128x4xf32> to vector<128x1xf32>
    %14 = vector.extract_strided_slice %0 {offsets = [2, 0], sizes = [1, 128], strides = [1, 1]} : vector<4x128xf32> to vector<1x128xf32>
    %15 = vector.broadcast %13 : vector<128x1xf32> to vector<128x128xf32>
    %16 = vector.broadcast %14 : vector<1x128xf32> to vector<128x128xf32>
    %17 = arith.mulf %15, %16 : vector<128x128xf32>
    %18 = arith.addf %12, %17 : vector<128x128xf32>
    %19 = vector.extract_strided_slice %1 {offsets = [0, 3], sizes = [128, 1], strides = [1, 1]} : vector<128x4xf32> to vector<128x1xf32>
    %20 = vector.extract_strided_slice %0 {offsets = [3, 0], sizes = [1, 128], strides = [1, 1]} : vector<4x128xf32> to vector<1x128xf32>
    %21 = vector.broadcast %19 : vector<128x1xf32> to vector<128x128xf32>
    %22 = vector.broadcast %20 : vector<1x128xf32> to vector<128x128xf32>
    %23 = arith.mulf %21, %22 : vector<128x128xf32>
    %24 = arith.addf %18, %23 : vector<128x128xf32>
    %c0_3 = arith.constant 0 : index
    %c0_4 = arith.constant 0 : index
    %25 = vector.load %arg3[%c0_3, %c0_4] : memref<128x1xf32, #tpu.memory_space<vmem>>, vector<128x1xf32>
    %26 = vector.broadcast %25 : vector<128x1xf32> to vector<128x128xf32>
    %27 = arith.addf %24, %26 : vector<128x128xf32>
    %cst = arith.constant 0.000000e+00 : f32
    %28 = vector.broadcast %cst : f32 to vector<128x128xf32>
    %29 = arith.maximumf %27, %28 : vector<128x128xf32>
    %c0_5 = arith.constant 0 : index
    %c0_6 = arith.constant 0 : index
    %30 = vector.load %arg4[%c0_5, %c0_6] : memref<2x128xf32, #tpu.memory_space<vmem>>, vector<2x128xf32>
    %cst_7 = arith.constant dense<0.000000e+00> : vector<2x128xf32>
    %31 = tpu.matmul %30, %29, %cst_7 {dimension_numbers = #tpu.dot_dimension_numbers<[1], [0], [0], [1], [0, 0, 1, 1], [], []>} : vector<2x128xf32>, vector<128x128xf32>, vector<2x128xf32> -> vector<2x128xf32>
    %c0_8 = arith.constant 0 : index
    %c0_9 = arith.constant 0 : index
    %32 = vector.load %arg5[%c0_8, %c0_9] : memref<2x1xf32, #tpu.memory_space<vmem>>, vector<2x1xf32>
    %33 = vector.broadcast %32 : vector<2x1xf32> to vector<2x128xf32>
    %34 = arith.addf %31, %33 : vector<2x128xf32>
    %35 = vector.extract_strided_slice %34 {offsets = [1, 0], sizes = [1, 128], strides = [1, 1]} : vector<2x128xf32> to vector<1x128xf32>
    %36 = vector.extract_strided_slice %34 {offsets = [0, 0], sizes = [1, 128], strides = [1, 1]} : vector<2x128xf32> to vector<1x128xf32>
    %37 = arith.subf %35, %36 : vector<1x128xf32>
    %cst_10 = arith.constant 0.000000e+00 : f32
    %38 = vector.broadcast %cst_10 : f32 to vector<1x128xf32>
    %39 = arith.subf %38, %37 : vector<1x128xf32>
    %40 = math.exp %39 : vector<1x128xf32>
    %cst_11 = arith.constant 1.000000e+00 : f32
    %41 = vector.broadcast %cst_11 : f32 to vector<1x128xf32>
    %42 = arith.addf %41, %40 : vector<1x128xf32>
    %43 = tpu.reciprocal %42 {approx = true} : vector<1x128xf32> -> vector<1x128xf32>
    %cst_12 = arith.constant 1.000000e+00 : f32
    %44 = vector.broadcast %cst_12 : f32 to vector<1x128xf32>
    %45 = arith.subf %44, %43 : vector<1x128xf32>
    %46 = tpu.concatenate %45, %43 in 0 : vector<1x128xf32>, vector<1x128xf32> -> vector<2x128xf32>
    %c0_13 = arith.constant 0 : index
    %c0_14 = arith.constant 0 : index
    %47 = vector.load %arg6[%c0_13, %c0_14] : memref<2x128xf32, #tpu.memory_space<vmem>>, vector<2x128xf32>
    tpu.vector_store %arg6[%c0_13, %c0_14], %46 {strides = array<i32>} : memref<2x128xf32, #tpu.memory_space<vmem>>, vector<2x128xf32>,
    return
  }
  func.func @transform_0(%arg0: i32) -> (i32, i32) {
    %c0_i32 = arith.constant 0 : i32
    %c0_i32_0 = arith.constant 0 : i32
    return %c0_i32, %arg0 : i32, i32
  }
  func.func @transform_1(%arg0: i32) -> (i32, i32) {
    %c0_i32 = arith.constant 0 : i32
    %c0_i32_0 = arith.constant 0 : i32
    %c0_i32_1 = arith.constant 0 : i32
    return %c0_i32, %c0_i32_0 : i32, i32
  }
  func.func @transform_2(%arg0: i32) -> (i32, i32) {
    %c0_i32 = arith.constant 0 : i32
    %c0_i32_0 = arith.constant 0 : i32
    %c0_i32_1 = arith.constant 0 : i32
    return %c0_i32, %c0_i32_0 : i32, i32
  }
  func.func @transform_3(%arg0: i32) -> (i32, i32) {
    %c0_i32 = arith.constant 0 : i32
    %c0_i32_0 = arith.constant 0 : i32
    %c0_i32_1 = arith.constant 0 : i32
    return %c0_i32, %c0_i32_0 : i32, i32
  }
  func.func @transform_4(%arg0: i32) -> (i32, i32) {
    %c0_i32 = arith.constant 0 : i32
    %c0_i32_0 = arith.constant 0 : i32
    %c0_i32_1 = arith.constant 0 : i32
    return %c0_i32, %c0_i32_0 : i32, i32
  }
  func.func @transform_5(%arg0: i32) -> (i32, i32) {
    %c0_i32 = arith.constant 0 : i32
    %c0_i32_0 = arith.constant 0 : i32
    return %c0_i32, %arg0 : i32, i32
  }
}

</mosaic_0001>

<llo_original>
// kernel: tpu_custom_call.1
$region0: #{tpu_custom_call.1}
  #allocation0 [shape = 'u32[]', space=smem, size = 0x4, offset = 0x4, fixed_abs, tag = 'smem constant byte address 0x4 - core index']
  #allocation1 [shape = 'u32[144,128]{1,0:T(1,128)}', space=vmem, size = 0x12000, scoped, tag = 'internal scratch']
  %s0 = inlined_call_operand.vmem [shape: f32[4,256], index: 0, kind: input, shape index: {}]
  %s1 = inlined_call_operand.vmem [shape: f32[128,4], index: 1, kind: input, shape index: {}]
  %s2 = inlined_call_operand.vmem [shape: f32[128,1], index: 2, kind: input, shape index: {}]
  %s3 = inlined_call_operand.vmem [shape: f32[2,128], index: 3, kind: input, shape index: {}]
  %s4 = inlined_call_operand.vmem [shape: f32[2,1], index: 4, kind: input, shape index: {}]
  %s5 = inlined_call_operand.hbm [shape: f32[2,256], index: 5, kind: output, shape index: {}]
  %s6 = sld [smem:[#allocation0]]
  $region53: #{tpu_custom_call.1} parent=0
    _
  %s8 = ssub.s32 1, %s6
  %s9 = scalar_select 0, %s8, %s6
  $region1: #{tpu_custom_call.1} parent=0
    #allocation2 [shape = 'u8[2048]{0}', space=vmem, size = 0x800, scoped, tag = 'output window, operand 0']
    #allocation3 [shape = 's32[2]{0}', space=sflag, size = 0x8, scoped, tag = 'scoped memory for tpu_custom_call.1']
    %10 = vsyncpa [#allocation3], 0
    %s11 = scalar_lea.sflag [#allocation3], 1
    %12 = vsyncpa %s11, 0
    loop: start=0, step=1, limit=4
    $region2: #{tpu_custom_call.1} parent=1 // loop_pre_header
      _
    $region3: #{tpu_custom_call.1} parent=1 // loop_header
      %s14 = sphi 0, %s18
      %p15 = scmp.ge.s32.totalorder %s14, 4
      %s24 = sphi 0, %s26
      %s27 = sphi 0, %s24
      %s28 = sphi 0, %s27
      %s44 = sphi 0, %s28
      %s48 = sphi 0, %s48
      %s50 = sphi 0, %s48
      %s51 = sphi 0, %s50
      %s65 = sphi 0, %s51
      %s69 = sphi 0, %s69
      %s71 = sphi 0, %s69
      %s72 = sphi 0, %s71
      %s86 = sphi 0, %s72
      %s90 = sphi 0, %s90
      %s92 = sphi 0, %s90
      %s93 = sphi 0, %s92
      %s107 = sphi 0, %s93
      %s111 = sphi 0, %s111
      %s113 = sphi 0, %s111
      %s114 = sphi 0, %s113
      %s128 = sphi 0, %s114
      %s134 = sphi 0, %s136
      %s137 = sphi 0, %s134
      %s138 = sphi 0, %s137
      %s154 = sphi 0, %s138
    $region4: #{tpu_custom_call.1} parent=1 // loop_header_branch
      %17 = sbr.rel (%p15) target = $region8
    $region5: #{tpu_custom_call.1} parent=1 // loop_body
      %s19 = ssub.s32 %s14, 1
      %s20 = ssub.s32 %s14, 2
      %s21 = sadd.s32 %s14, 1
      %s22 = ssub.s32 %s14, %s21
      %p23 = scmp.eq.s32.totalorder %s22, 0
      %s25 = sadd.s32 %s24, 1
      %s26 = scalar_select %p23, %s24, %s25
      %p29 = pneg %p23
      %p30 = scmp.eq.s32.totalorder %s14, 1
      %p31 = por %p29, %p30
      %p32 = scmp.ne.s32.totalorder %s24, %s27
      %p33 = scmp.eq.s32.totalorder %s14, 0
      %p34 = por %p32, %p33
      %p35 = scmp.ne.s32.totalorder %s24, %s27
      %p36 = scmp.eq.s32.totalorder %s19, 1
      %p37 = por %p35, %p36
      %p38 = scmp.ne.s32.totalorder %s27, %s28
      %p39 = scmp.eq.s32.totalorder %s19, 0
      %p40 = por %p38, %p39
      %p41 = scmp.ne.s32.totalorder %s27, %s28
      %p42 = scmp.eq.s32.totalorder %s20, 1
      %p43 = por %p41, %p42
      %p45 = scmp.ne.s32.totalorder %s28, %s44
      %p46 = scmp.eq.s32.totalorder %s20, 0
      %p47 = por %p45, %p46
      %s49 = sadd.s32 %s48, 1
      %p52 = scmp.eq.s32.totalorder %s14, 1
      %p53 = scmp.ne.s32.totalorder %s48, %s50
      %p54 = scmp.eq.s32.totalorder %s14, 0
      %p55 = por %p53, %p54
      %p56 = scmp.ne.s32.totalorder %s48, %s50
      %p57 = scmp.eq.s32.totalorder %s19, 1
      %p58 = por %p56, %p57
      %p59 = scmp.ne.s32.totalorder %s50, %s51
      %p60 = scmp.eq.s32.totalorder %s19, 0
      %p61 = por %p59, %p60
      %p62 = scmp.ne.s32.totalorder %s50, %s51
      %p63 = scmp.eq.s32.totalorder %s20, 1
      %p64 = por %p62, %p63
      %p66 = scmp.ne.s32.totalorder %s51, %s65
      %p67 = scmp.eq.s32.totalorder %s20, 0
      %p68 = por %p66, %p67
      %s70 = sadd.s32 %s69, 1
      %p73 = scmp.eq.s32.totalorder %s14, 1
      %p74 = scmp.ne.s32.totalorder %s69, %s71
      %p75 = scmp.eq.s32.totalorder %s14, 0
      %p76 = por %p74, %p75
      %p77 = scmp.ne.s32.totalorder %s69, %s71
      %p78 = scmp.eq.s32.totalorder %s19, 1
      %p79 = por %p77, %p78
      %p80 = scmp.ne.s32.totalorder %s71, %s72
      %p81 = scmp.eq.s32.totalorder %s19, 0
      %p82 = por %p80, %p81
      %p83 = scmp.ne.s32.totalorder %s71, %s72
      %p84 = scmp.eq.s32.totalorder %s20, 1
      %p85 = por %p83, %p84
      %p87 = scmp.ne.s32.totalorder %s72, %s86
      %p88 = scmp.eq.s32.totalorder %s20, 0
      %p89 = por %p87, %p88
      %s91 = sadd.s32 %s90, 1
      %p94 = scmp.eq.s32.totalorder %s14, 1
      %p95 = scmp.ne.s32.totalorder %s90, %s92
      %p96 = scmp.eq.s32.totalorder %s14, 0
      %p97 = por %p95, %p96
      %p98 = scmp.ne.s32.totalorder %s90, %s92
      %p99 = scmp.eq.s32.totalorder %s19, 1
      %p100 = por %p98, %p99
      %p101 = scmp.ne.s32.totalorder %s92, %s93
      %p102 = scmp.eq.s32.totalorder %s19, 0
      %p103 = por %p101, %p102
      %p104 = scmp.ne.s32.totalorder %s92, %s93
      %p105 = scmp.eq.s32.totalorder %s20, 1
      %p106 = por %p104, %p105
      %p108 = scmp.ne.s32.totalorder %s93, %s107
      %p109 = scmp.eq.s32.totalorder %s20, 0
      %p110 = por %p108, %p109
      %s112 = sadd.s32 %s111, 1
      %p115 = scmp.eq.s32.totalorder %s14, 1
      %p116 = scmp.ne.s32.totalorder %s111, %s113
      %p117 = scmp.eq.s32.totalorder %s14, 0
      %p118 = por %p116, %p117
      %p119 = scmp.ne.s32.totalorder %s111, %s113
      %p120 = scmp.eq.s32.totalorder %s19, 1
      %p121 = por %p119, %p120
      %p122 = scmp.ne.s32.totalorder %s113, %s114
      %p123 = scmp.eq.s32.totalorder %s19, 0
      %p124 = por %p122, %p123
      %p125 = scmp.ne.s32.totalorder %s113, %s114
      %p126 = scmp.eq.s32.totalorder %s20, 1
      %p127 = por %p125, %p126
      %p129 = scmp.ne.s32.totalorder %s114, %s128
      %p130 = scmp.eq.s32.totalorder %s20, 0
      %p131 = por %p129, %p130
      %s132 = ssub.s32 %s14, %s21
      %p133 = scmp.eq.s32.totalorder %s132, 0
      %s135 = sadd.s32 %s134, 1
      %s136 = scalar_select %p133, %s134, %s135
      %p139 = pneg %p133
      %p140 = scmp.eq.s32.totalorder %s14, 1
      %p141 = por %p139, %p140
      %p142 = scmp.ne.s32.totalorder %s134, %s137
      %p143 = scmp.eq.s32.totalorder %s14, 0
      %p144 = por %p142, %p143
      %p145 = scmp.ne.s32.totalorder %s134, %s137
      %p146 = scmp.eq.s32.totalorder %s19, 1
      %p147 = por %p145, %p146
      %p148 = scmp.ne.s32.totalorder %s137, %s138
      %p149 = scmp.eq.s32.totalorder %s19, 0
      %p150 = por %p148, %p149
      %p151 = scmp.ne.s32.totalorder %s137, %s138
      %p152 = scmp.eq.s32.totalorder %s20, 1
      %p153 = por %p151, %p152
      %p155 = scmp.ne.s32.totalorder %s138, %s154
      %p156 = scmp.eq.s32.totalorder %s20, 0
      %p157 = por %p155, %p156
      %p158 = scmp.le.s32.totalorder 1, %s14
      %p159 = scmp.lt.s32.totalorder %s14, 3
      %p160 = pnand %p158, %p159
      %p161 = pneg %p160
      // Predicated region
      $region9: #{tpu_custom_call.1} parent=5 // pred_check
        _
      $region10: #{tpu_custom_call.1} parent=5 // pred_check_branch
        %163 = sbr.rel (%p160) target = $region12
      $region11: #{tpu_custom_call.1} parent=5 // pred_region
        %s164 = ssub.s32 %s14, 1
        // Predicated region
        $region13: #{tpu_custom_call.1} parent=11 // pred_check
          %p165 = pneg %p61
        $region14: #{tpu_custom_call.1} parent=11 // pred_check_branch
          %167 = sbr.rel (%p165) target = $region16
        $region15: #{tpu_custom_call.1} parent=11 // pred_region
          _
        $region16: #{tpu_custom_call.1} parent=11 // pred_fallthru
          _
        // Predicated region
        $region17: #{tpu_custom_call.1} parent=11 // pred_check
          %p168 = pneg %p82
        $region18: #{tpu_custom_call.1} parent=11 // pred_check_branch
          %170 = sbr.rel (%p168) target = $region20
        $region19: #{tpu_custom_call.1} parent=11 // pred_region
          _
        $region20: #{tpu_custom_call.1} parent=11 // pred_fallthru
          _
        // Predicated region
        $region21: #{tpu_custom_call.1} parent=11 // pred_check
          %p171 = pneg %p103
        $region22: #{tpu_custom_call.1} parent=11 // pred_check_branch
          %173 = sbr.rel (%p171) target = $region24
        $region23: #{tpu_custom_call.1} parent=11 // pred_region
          _
        $region24: #{tpu_custom_call.1} parent=11 // pred_fallthru
          _
        // Predicated region
        $region25: #{tpu_custom_call.1} parent=11 // pred_check
          %p174 = pneg %p124
        $region26: #{tpu_custom_call.1} parent=11 // pred_check_branch
          %176 = sbr.rel (%p174) target = $region28
        $region27: #{tpu_custom_call.1} parent=11 // pred_region
          _
        $region28: #{tpu_custom_call.1} parent=11 // pred_fallthru
          _
      $region12: #{tpu_custom_call.1} parent=5 // pred_fallthru
        _
      %p177 = scmp.lt.s32.totalorder %s14, 2
      // Predicated region
      $region29: #{tpu_custom_call.1} parent=5 // pred_check
        %p178 = pneg %p177
      $region30: #{tpu_custom_call.1} parent=5 // pred_check_branch
        %180 = sbr.rel (%p178) target = $region32
      $region31: #{tpu_custom_call.1} parent=5 // pred_region
        // Predicated region
        $region33: #{tpu_custom_call.1} parent=31 // pred_check
          %p181 = pneg %p34
        $region34: #{tpu_custom_call.1} parent=31 // pred_check_branch
          %183 = sbr.rel (%p181) target = $region36
        $region35: #{tpu_custom_call.1} parent=31 // pred_region
          %p184 = scmp.lt.s32.totalorder %s14, 1
          %s185 = scalar_select %p184, %s14, 1
          %s186 = smul.addr %s185, 4
          %s187 = scalar_lea.vmem %s0, %s186
        $region36: #{tpu_custom_call.1} parent=31 // pred_fallthru
          _
      $region32: #{tpu_custom_call.1} parent=5 // pred_fallthru
        _
      %p188 = scmp.le.s32.totalorder 1, %s14
      %p189 = scmp.lt.s32.totalorder %s14, 3
      %p190 = pnand %p188, %p189
      %p191 = pneg %p190
      // Predicated region
      $region37: #{tpu_custom_call.1} parent=5 // pred_check
        _
      $region38: #{tpu_custom_call.1} parent=5 // pred_check_branch
        %193 = sbr.rel (%p190) target = $region40
      $region39: #{tpu_custom_call.1} parent=5 // pred_region
        %s194 = ssub.s32 %s14, 1
        %p195 = scmp.lt.s32.totalorder %s19, 1
        %s196 = scalar_select %p195, %s19, 1
        %s197 = smul.addr %s196, 4
        %s198 = scalar_lea.vmem %s0, %s197
        %p199 = pneg %p40
        %p200 = pneg %p37
        %p201 = pneg %p61
        %p202 = pneg %p58
        %p203 = pneg %p82
        %p204 = pneg %p79
        %p205 = pneg %p103
        %p206 = pneg %p100
        %p207 = pneg %p124
        %p208 = pneg %p121
        %p209 = pneg %p150
        %p210 = pneg %p147
        %s211 = sand.u32 %s137, 1
        %s212 = scalar_lea.sflag [#allocation3], %s211
        %s213 = sand.u32 %s137, 1
        %s214 = smul.addr %s213, 2
        %s215 = scalar_lea.vmem [#allocation2], %s214
        %p216 = scmp.lt.s32.totalorder %s19, 1
        %s217 = scalar_select %p216, %s19, 1
        %s218 = smul.addr %s217, 4
        %s219 = scalar_lea.vmem %s0, %s218
        %v220 = vld [vmem:[%s219] sm:$0xf]
        %v221 = vld [vmem:[%s1] sm:$0xff]
        %v222 = vld [vmem:[%s1 + $0x8] sm:$0xff]
        %v223 = vld [vmem:[%s1 + $0x10] sm:$0xff]
        %v224 = vld [vmem:[%s1 + $0x18] sm:$0xff]
        %v225 = vld [vmem:[%s1 + $0x20] sm:$0xff]
        %v226 = vld [vmem:[%s1 + $0x28] sm:$0xff]
        %v227 = vld [vmem:[%s1 + $0x30] sm:$0xff]
        %v228 = vld [vmem:[%s1 + $0x38] sm:$0xff]
        %v229 = vld [vmem:[%s1 + $0x40] sm:$0xff]
        %v230 = vld [vmem:[%s1 + $0x48] sm:$0xff]
        %v231 = vld [vmem:[%s1 + $0x50] sm:$0xff]
        %v232 = vld [vmem:[%s1 + $0x58] sm:$0xff]
        %v233 = vld [vmem:[%s1 + $0x60] sm:$0xff]
        %v234 = vld [vmem:[%s1 + $0x68] sm:$0xff]
        %v235 = vld [vmem:[%s1 + $0x70] sm:$0xff]
        %v236 = vld [vmem:[%s1 + $0x78] sm:$0xff]
        %238 = vset.pattern.permute.xlu0 0
        %239 = vperm.xlu0 %238, %v221
        %v240 = vpop.permute.xlu0 %239
        %243 = vset.pattern.permute.xlu0 0
        %244 = vperm.xlu0 %243, %v222
        %v245 = vpop.permute.xlu0 %244
        %248 = vset.pattern.permute.xlu0 0
        %249 = vperm.xlu0 %248, %v223
        %v250 = vpop.permute.xlu0 %249
        %253 = vset.pattern.permute.xlu0 0
        %254 = vperm.xlu0 %253, %v224
        %v255 = vpop.permute.xlu0 %254
        %258 = vset.pattern.permute.xlu0 0
        %259 = vperm.xlu0 %258, %v225
        %v260 = vpop.permute.xlu0 %259
        %263 = vset.pattern.permute.xlu0 0
        %264 = vperm.xlu0 %263, %v226
        %v265 = vpop.permute.xlu0 %264
        %268 = vset.pattern.permute.xlu0 0
        %269 = vperm.xlu0 %268, %v227
        %v270 = vpop.permute.xlu0 %269
        %273 = vset.pattern.permute.xlu0 0
        %274 = vperm.xlu0 %273, %v228
        %v275 = vpop.permute.xlu0 %274
        %278 = vset.pattern.permute.xlu0 0
        %279 = vperm.xlu0 %278, %v229
        %v280 = vpop.permute.xlu0 %279
        %283 = vset.pattern.permute.xlu0 0
        %284 = vperm.xlu0 %283, %v230
        %v285 = vpop.permute.xlu0 %284
        %288 = vset.pattern.permute.xlu0 0
        %289 = vperm.xlu0 %288, %v231
        %v290 = vpop.permute.xlu0 %289
        %293 = vset.pattern.permute.xlu0 0
        %294 = vperm.xlu0 %293, %v232
        %v295 = vpop.permute.xlu0 %294
        %298 = vset.pattern.permute.xlu0 0
        %299 = vperm.xlu0 %298, %v233
        %v300 = vpop.permute.xlu0 %299
        %303 = vset.pattern.permute.xlu0 0
        %304 = vperm.xlu0 %303, %v234
        %v305 = vpop.permute.xlu0 %304
        %308 = vset.pattern.permute.xlu0 0
        %309 = vperm.xlu0 %308, %v235
        %v310 = vpop.permute.xlu0 %309
        %313 = vset.pattern.permute.xlu0 0
        %314 = vperm.xlu0 %313, %v236
        %v315 = vpop.permute.xlu0 %314
        %v317 = vlaneseq
        %v318 = vshrl.u32 %v317, 7
        %v319 = vsub.s32 0, %v318
        %v320 = vrot.slane %v220, %v319
        %v321 = vmul.f32 %v240, %v320
        %v322 = vmul.f32 %v245, %v320
        %v323 = vmul.f32 %v250, %v320
        %v324 = vmul.f32 %v255, %v320
        %v325 = vmul.f32 %v260, %v320
        %v326 = vmul.f32 %v265, %v320
        %v327 = vmul.f32 %v270, %v320
        %v328 = vmul.f32 %v275, %v320
        %v329 = vmul.f32 %v280, %v320
        %v330 = vmul.f32 %v285, %v320
        %v331 = vmul.f32 %v290, %v320
        %v332 = vmul.f32 %v295, %v320
        %v333 = vmul.f32 %v300, %v320
        %v334 = vmul.f32 %v305, %v320
        %v335 = vmul.f32 %v310, %v320
        %v336 = vmul.f32 %v315, %v320
        %337 = vset.pattern.permute.xlu0 1
        %338 = vperm.xlu0 %337, %v221
        %v339 = vpop.permute.xlu0 %338
        %341 = vset.pattern.permute.xlu0 1
        %342 = vperm.xlu0 %341, %v222
        %v343 = vpop.permute.xlu0 %342
        %345 = vset.pattern.permute.xlu0 1
        %346 = vperm.xlu0 %345, %v223
        %v347 = vpop.permute.xlu0 %346
        %349 = vset.pattern.permute.xlu0 1
        %350 = vperm.xlu0 %349, %v224
        %v351 = vpop.permute.xlu0 %350
        %353 = vset.pattern.permute.xlu0 1
        %354 = vperm.xlu0 %353, %v225
        %v355 = vpop.permute.xlu0 %354
        %357 = vset.pattern.permute.xlu0 1
        %358 = vperm.xlu0 %357, %v226
        %v359 = vpop.permute.xlu0 %358
        %361 = vset.pattern.permute.xlu0 1
        %362 = vperm.xlu0 %361, %v227
        %v363 = vpop.permute.xlu0 %362
        %365 = vset.pattern.permute.xlu0 1
        %366 = vperm.xlu0 %365, %v228
        %v367 = vpop.permute.xlu0 %366
        %369 = vset.pattern.permute.xlu0 1
        %370 = vperm.xlu0 %369, %v229
        %v371 = vpop.permute.xlu0 %370
        %373 = vset.pattern.permute.xlu0 1
        %374 = vperm.xlu0 %373, %v230
        %v375 = vpop.permute.xlu0 %374
        %377 = vset.pattern.permute.xlu0 1
        %378 = vperm.xlu0 %377, %v231
        %v379 = vpop.permute.xlu0 %378
        %381 = vset.pattern.permute.xlu0 1
        %382 = vperm.xlu0 %381, %v232
        %v383 = vpop.permute.xlu0 %382
        %385 = vset.pattern.permute.xlu0 1
        %386 = vperm.xlu0 %385, %v233
        %v387 = vpop.permute.xlu0 %386
        %389 = vset.pattern.permute.xlu0 1
        %390 = vperm.xlu0 %389, %v234
        %v391 = vpop.permute.xlu0 %390
        %393 = vset.pattern.permute.xlu0 1
        %394 = vperm.xlu0 %393, %v235
        %v395 = vpop.permute.xlu0 %394
        %397 = vset.pattern.permute.xlu0 1
        %398 = vperm.xlu0 %397, %v236
        %v399 = vpop.permute.xlu0 %398
        %v401 = vlaneseq
        %v402 = vshrl.u32 %v401, 7
        %v403 = vsub.s32 1, %v402
        %v404 = vrot.slane %v220, %v403
        %v405 = vmul.f32 %v339, %v404
        %v406 = vmul.f32 %v343, %v404
        %v407 = vmul.f32 %v347, %v404
        %v408 = vmul.f32 %v351, %v404
        %v409 = vmul.f32 %v355, %v404
        %v410 = vmul.f32 %v359, %v404
        %v411 = vmul.f32 %v363, %v404
        %v412 = vmul.f32 %v367, %v404
        %v413 = vmul.f32 %v371, %v404
        %v414 = vmul.f32 %v375, %v404
        %v415 = vmul.f32 %v379, %v404
        %v416 = vmul.f32 %v383, %v404
        %v417 = vmul.f32 %v387, %v404
        %v418 = vmul.f32 %v391, %v404
        %v419 = vmul.f32 %v395, %v404
        %v420 = vmul.f32 %v399, %v404
        %v421 = vadd.f32 %v321, %v405
        %v422 = vadd.f32 %v322, %v406
        %v423 = vadd.f32 %v323, %v407
        %v424 = vadd.f32 %v324, %v408
        %v425 = vadd.f32 %v325, %v409
        %v426 = vadd.f32 %v326, %v410
        %v427 = vadd.f32 %v327, %v411
        %v428 = vadd.f32 %v328, %v412
        %v429 = vadd.f32 %v329, %v413
        %v430 = vadd.f32 %v330, %v414
        %v431 = vadd.f32 %v331, %v415
        %v432 = vadd.f32 %v332, %v416
        %v433 = vadd.f32 %v333, %v417
        %v434 = vadd.f32 %v334, %v418
        %v435 = vadd.f32 %v335, %v419
        %v436 = vadd.f32 %v336, %v420
        %437 = vset.pattern.permute.xlu0 2
        %438 = vperm.xlu0 %437, %v221
        %v439 = vpop.permute.xlu0 %438
        %441 = vset.pattern.permute.xlu0 2
        %442 = vperm.xlu0 %441, %v222
        %v443 = vpop.permute.xlu0 %442
        %445 = vset.pattern.permute.xlu0 2
        %446 = vperm.xlu0 %445, %v223
        %v447 = vpop.permute.xlu0 %446
        %449 = vset.pattern.permute.xlu0 2
        %450 = vperm.xlu0 %449, %v224
        %v451 = vpop.permute.xlu0 %450
        %453 = vset.pattern.permute.xlu0 2
        %454 = vperm.xlu0 %453, %v225
        %v455 = vpop.permute.xlu0 %454
        %457 = vset.pattern.permute.xlu0 2
        %458 = vperm.xlu0 %457, %v226
        %v459 = vpop.permute.xlu0 %458
        %461 = vset.pattern.permute.xlu0 2
        %462 = vperm.xlu0 %461, %v227
        %v463 = vpop.permute.xlu0 %462
        %465 = vset.pattern.permute.xlu0 2
        %466 = vperm.xlu0 %465, %v228
        %v467 = vpop.permute.xlu0 %466
        %469 = vset.pattern.permute.xlu0 2
        %470 = vperm.xlu0 %469, %v229
        %v471 = vpop.permute.xlu0 %470
        %473 = vset.pattern.permute.xlu0 2
        %474 = vperm.xlu0 %473, %v230
        %v475 = vpop.permute.xlu0 %474
        %477 = vset.pattern.permute.xlu0 2
        %478 = vperm.xlu0 %477, %v231
        %v479 = vpop.permute.xlu0 %478
        %481 = vset.pattern.permute.xlu0 2
        %482 = vperm.xlu0 %481, %v232
        %v483 = vpop.permute.xlu0 %482
        %485 = vset.pattern.permute.xlu0 2
        %486 = vperm.xlu0 %485, %v233
        %v487 = vpop.permute.xlu0 %486
        %489 = vset.pattern.permute.xlu0 2
        %490 = vperm.xlu0 %489, %v234
        %v491 = vpop.permute.xlu0 %490
        %493 = vset.pattern.permute.xlu0 2
        %494 = vperm.xlu0 %493, %v235
        %v495 = vpop.permute.xlu0 %494
        %497 = vset.pattern.permute.xlu0 2
        %498 = vperm.xlu0 %497, %v236
        %v499 = vpop.permute.xlu0 %498
        %v501 = vlaneseq
        %v502 = vshrl.u32 %v501, 7
        %v503 = vsub.s32 2, %v502
        %v504 = vrot.slane %v220, %v503
        %v505 = vmul.f32 %v439, %v504
        %v506 = vmul.f32 %v443, %v504
        %v507 = vmul.f32 %v447, %v504
        %v508 = vmul.f32 %v451, %v504
        %v509 = vmul.f32 %v455, %v504
        %v510 = vmul.f32 %v459, %v504
        %v511 = vmul.f32 %v463, %v504
        %v512 = vmul.f32 %v467, %v504
        %v513 = vmul.f32 %v471, %v504
        %v514 = vmul.f32 %v475, %v504
        %v515 = vmul.f32 %v479, %v504
        %v516 = vmul.f32 %v483, %v504
        %v517 = vmul.f32 %v487, %v504
        %v518 = vmul.f32 %v491, %v504
        %v519 = vmul.f32 %v495, %v504
        %v520 = vmul.f32 %v499, %v504
        %v521 = vadd.f32 %v421, %v505
        %v522 = vadd.f32 %v422, %v506
        %v523 = vadd.f32 %v423, %v507
        %v524 = vadd.f32 %v424, %v508
        %v525 = vadd.f32 %v425, %v509
        %v526 = vadd.f32 %v426, %v510
        %v527 = vadd.f32 %v427, %v511
        %v528 = vadd.f32 %v428, %v512
        %v529 = vadd.f32 %v429, %v513
        %v530 = vadd.f32 %v430, %v514
        %v531 = vadd.f32 %v431, %v515
        %v532 = vadd.f32 %v432, %v516
        %v533 = vadd.f32 %v433, %v517
        %v534 = vadd.f32 %v434, %v518
        %v535 = vadd.f32 %v435, %v519
        %v536 = vadd.f32 %v436, %v520
        %537 = vset.pattern.permute.xlu0 3
        %538 = vperm.xlu0 %537, %v221
        %v539 = vpop.permute.xlu0 %538
        %541 = vset.pattern.permute.xlu0 3
        %542 = vperm.xlu0 %541, %v222
        %v543 = vpop.permute.xlu0 %542
        %545 = vset.pattern.permute.xlu0 3
        %546 = vperm.xlu0 %545, %v223
        %v547 = vpop.permute.xlu0 %546
        %549 = vset.pattern.permute.xlu0 3
        %550 = vperm.xlu0 %549, %v224
        %v551 = vpop.permute.xlu0 %550
        %553 = vset.pattern.permute.xlu0 3
        %554 = vperm.xlu0 %553, %v225
        %v555 = vpop.permute.xlu0 %554
        %557 = vset.pattern.permute.xlu0 3
        %558 = vperm.xlu0 %557, %v226
        %v559 = vpop.permute.xlu0 %558
        %561 = vset.pattern.permute.xlu0 3
        %562 = vperm.xlu0 %561, %v227
        %v563 = vpop.permute.xlu0 %562
        %565 = vset.pattern.permute.xlu0 3
        %566 = vperm.xlu0 %565, %v228
        %v567 = vpop.permute.xlu0 %566
        %569 = vset.pattern.permute.xlu0 3
        %570 = vperm.xlu0 %569, %v229
        %v571 = vpop.permute.xlu0 %570
        %573 = vset.pattern.permute.xlu0 3
        %574 = vperm.xlu0 %573, %v230
        %v575 = vpop.permute.xlu0 %574
        %577 = vset.pattern.permute.xlu0 3
        %578 = vperm.xlu0 %577, %v231
        %v579 = vpop.permute.xlu0 %578
        %581 = vset.pattern.permute.xlu0 3
        %582 = vperm.xlu0 %581, %v232
        %v583 = vpop.permute.xlu0 %582
        %585 = vset.pattern.permute.xlu0 3
        %586 = vperm.xlu0 %585, %v233
        %v587 = vpop.permute.xlu0 %586
        %589 = vset.pattern.permute.xlu0 3
        %590 = vperm.xlu0 %589, %v234
        %v591 = vpop.permute.xlu0 %590
        %593 = vset.pattern.permute.xlu0 3
        %594 = vperm.xlu0 %593, %v235
        %v595 = vpop.permute.xlu0 %594
        %597 = vset.pattern.permute.xlu0 3
        %598 = vperm.xlu0 %597, %v236
        %v599 = vpop.permute.xlu0 %598
        %v601 = vlaneseq
        %v602 = vshrl.u32 %v601, 7
        %v603 = vsub.s32 3, %v602
        %v604 = vrot.slane %v220, %v603
        %v605 = vmul.f32 %v539, %v604
        %v606 = vmul.f32 %v543, %v604
        %v607 = vmul.f32 %v547, %v604
        %v608 = vmul.f32 %v551, %v604
        %v609 = vmul.f32 %v555, %v604
        %v610 = vmul.f32 %v559, %v604
        %v611 = vmul.f32 %v563, %v604
        %v612 = vmul.f32 %v567, %v604
        %v613 = vmul.f32 %v571, %v604
        %v614 = vmul.f32 %v575, %v604
        %v615 = vmul.f32 %v579, %v604
        %v616 = vmul.f32 %v583, %v604
        %v617 = vmul.f32 %v587, %v604
        %v618 = vmul.f32 %v591, %v604
        %v619 = vmul.f32 %v595, %v604
        %v620 = vmul.f32 %v599, %v604
        %v621 = vadd.f32 %v521, %v605
        %v622 = vadd.f32 %v522, %v606
        %v623 = vadd.f32 %v523, %v607
        %v624 = vadd.f32 %v524, %v608
        %v625 = vadd.f32 %v525, %v609
        %v626 = vadd.f32 %v526, %v610
        %v627 = vadd.f32 %v527, %v611
        %v628 = vadd.f32 %v528, %v612
        %v629 = vadd.f32 %v529, %v613
        %v630 = vadd.f32 %v530, %v614
        %v631 = vadd.f32 %v531, %v615
        %v632 = vadd.f32 %v532, %v616
        %v633 = vadd.f32 %v533, %v617
        %v634 = vadd.f32 %v534, %v618
        %v635 = vadd.f32 %v535, %v619
        %v636 = vadd.f32 %v536, %v620
        %v637 = vld [vmem:[%s2] sm:$0xff]
        %v638 = vld [vmem:[%s2 + $0x8] sm:$0xff]
        %v639 = vld [vmem:[%s2 + $0x10] sm:$0xff]
        %v640 = vld [vmem:[%s2 + $0x18] sm:$0xff]
        %v641 = vld [vmem:[%s2 + $0x20] sm:$0xff]
        %v642 = vld [vmem:[%s2 + $0x28] sm:$0xff]
        %v643 = vld [vmem:[%s2 + $0x30] sm:$0xff]
        %v644 = vld [vmem:[%s2 + $0x38] sm:$0xff]
        %v645 = vld [vmem:[%s2 + $0x40] sm:$0xff]
        %v646 = vld [vmem:[%s2 + $0x48] sm:$0xff]
        %v647 = vld [vmem:[%s2 + $0x50] sm:$0xff]
        %v648 = vld [vmem:[%s2 + $0x58] sm:$0xff]
        %v649 = vld [vmem:[%s2 + $0x60] sm:$0xff]
        %v650 = vld [vmem:[%s2 + $0x68] sm:$0xff]
        %v651 = vld [vmem:[%s2 + $0x70] sm:$0xff]
        %v652 = vld [vmem:[%s2 + $0x78] sm:$0xff]
        %654 = vset.pattern.permute.xlu0 0
        %655 = vperm.xlu0 %654, %v637
        %v656 = vpop.permute.xlu0 %655
        %659 = vset.pattern.permute.xlu0 0
        %660 = vperm.xlu0 %659, %v638
        %v661 = vpop.permute.xlu0 %660
        %664 = vset.pattern.permute.xlu0 0
        %665 = vperm.xlu0 %664, %v639
        %v666 = vpop.permute.xlu0 %665
        %669 = vset.pattern.permute.xlu0 0
        %670 = vperm.xlu0 %669, %v640
        %v671 = vpop.permute.xlu0 %670
        %674 = vset.pattern.permute.xlu0 0
        %675 = vperm.xlu0 %674, %v641
        %v676 = vpop.permute.xlu0 %675
        %679 = vset.pattern.permute.xlu0 0
        %680 = vperm.xlu0 %679, %v642
        %v681 = vpop.permute.xlu0 %680
        %684 = vset.pattern.permute.xlu0 0
        %685 = vperm.xlu0 %684, %v643
        %v686 = vpop.permute.xlu0 %685
        %689 = vset.pattern.permute.xlu0 0
        %690 = vperm.xlu0 %689, %v644
        %v691 = vpop.permute.xlu0 %690
        %694 = vset.pattern.permute.xlu0 0
        %695 = vperm.xlu0 %694, %v645
        %v696 = vpop.permute.xlu0 %695
        %699 = vset.pattern.permute.xlu0 0
        %700 = vperm.xlu0 %699, %v646
        %v701 = vpop.permute.xlu0 %700
        %704 = vset.pattern.permute.xlu0 0
        %705 = vperm.xlu0 %704, %v647
        %v706 = vpop.permute.xlu0 %705
        %709 = vset.pattern.permute.xlu0 0
        %710 = vperm.xlu0 %709, %v648
        %v711 = vpop.permute.xlu0 %710
        %714 = vset.pattern.permute.xlu0 0
        %715 = vperm.xlu0 %714, %v649
        %v716 = vpop.permute.xlu0 %715
        %719 = vset.pattern.permute.xlu0 0
        %720 = vperm.xlu0 %719, %v650
        %v721 = vpop.permute.xlu0 %720
        %724 = vset.pattern.permute.xlu0 0
        %725 = vperm.xlu0 %724, %v651
        %v726 = vpop.permute.xlu0 %725
        %729 = vset.pattern.permute.xlu0 0
        %730 = vperm.xlu0 %729, %v652
        %v731 = vpop.permute.xlu0 %730
        %v733 = vadd.f32 %v621, %v656
        %v734 = vadd.f32 %v622, %v661
        %v735 = vadd.f32 %v623, %v666
        %v736 = vadd.f32 %v624, %v671
        %v737 = vadd.f32 %v625, %v676
        %v738 = vadd.f32 %v626, %v681
        %v739 = vadd.f32 %v627, %v686
        %v740 = vadd.f32 %v628, %v691
        %v741 = vadd.f32 %v629, %v696
        %v742 = vadd.f32 %v630, %v701
        %v743 = vadd.f32 %v631, %v706
        %v744 = vadd.f32 %v632, %v711
        %v745 = vadd.f32 %v633, %v716
        %v746 = vadd.f32 %v634, %v721
        %v747 = vadd.f32 %v635, %v726
        %v748 = vadd.f32 %v636, %v731
        %v749 = vmax.f32 %v733, 0.0
        %v750 = vmax.f32 %v734, 0.0
        %v751 = vmax.f32 %v735, 0.0
        %v752 = vmax.f32 %v736, 0.0
        %v753 = vmax.f32 %v737, 0.0
        %v754 = vmax.f32 %v738, 0.0
        %v755 = vmax.f32 %v739, 0.0
        %v756 = vmax.f32 %v740, 0.0
        %v757 = vmax.f32 %v741, 0.0
        %v758 = vmax.f32 %v742, 0.0
        %v759 = vmax.f32 %v743, 0.0
        %v760 = vmax.f32 %v744, 0.0
        %v761 = vmax.f32 %v745, 0.0
        %v762 = vmax.f32 %v746, 0.0
        %v763 = vmax.f32 %v747, 0.0
        %v764 = vmax.f32 %v748, 0.0
        %v765 = vld [vmem:[%s3] sm:$0x3]
        %v766 = vld [vmem:[%s4] sm:$0x3]
        %768 = vset.pattern.permute.xlu0 0
        %769 = vperm.xlu0 %768, %v766
        %v770 = vpop.permute.xlu0 %769
        %772 = vmatprep.subr.mxu0 0.0
        %773 = vmatpush1.msra.mxu0 %v749
        %774 = vmatprep.subr.mxu0 0.0
        %775 = vmatpush1.msra.mxu0 %v750
        %776 = vmatprep.subr.mxu0 0.0
        %777 = vmatpush1.msra.mxu0 %v751
        %778 = vmatprep.subr.mxu0 0.0
        %779 = vmatpush1.msra.mxu0 %v752
        %780 = vmatprep.subr.mxu0 0.0
        %781 = vmatpush1.msra.mxu0 %v753
        %782 = vmatprep.subr.mxu0 0.0
        %783 = vmatpush1.msra.mxu0 %v754
        %784 = vmatprep.subr.mxu0 0.0
        %785 = vmatpush1.msra.mxu0 %v755
        %786 = vmatprep.subr.mxu0 0.0
        %787 = vmatpush1.msra.mxu0 %v756
        %788 = vmatprep.subr.mxu0 0.0
        %789 = vmatpush1.msra.mxu0 %v757
        %790 = vmatprep.subr.mxu0 0.0
        %791 = vmatpush1.msra.mxu0 %v758
        %792 = vmatprep.subr.mxu0 0.0
        %793 = vmatpush1.msra.mxu0 %v759
        %794 = vmatprep.subr.mxu0 0.0
        %795 = vmatpush1.msra.mxu0 %v760
        %796 = vmatprep.subr.mxu0 0.0
        %797 = vmatpush1.msra.mxu0 %v761
        %798 = vmatprep.subr.mxu0 0.0
        %799 = vmatpush1.msra.mxu0 %v762
        %800 = vmatprep.subr.mxu0 0.0
        %801 = vmatpush1.msra.mxu0 %v763
        %802 = vmatprep.subr.mxu0 0.0
        %803 = vmatpush1.msra.mxu0 %v764
        %804 = vmatprep.subr.mxu0 0.0
        %805 = vmatpush1.msra.mxu0 0.0
        %806 = vmatprep.subr.mxu0 0.0
        %807 = vmatpush1.msra.mxu0 0.0
        %808 = vmatprep.subr.mxu0 0.0
        %809 = vmatpush1.msra.mxu0 0.0
        %810 = vmatprep.subr.mxu0 0.0
        %811 = vmatpush1.msra.mxu0 0.0
        %812 = vmatprep.subr.mxu0 0.0
        %813 = vmatpush1.msra.mxu0 0.0
        %814 = vmatprep.subr.mxu0 0.0
        %815 = vmatpush1.msra.mxu0 0.0
        %816 = vmatprep.subr.mxu0 0.0
        %817 = vmatpush1.msra.mxu0 0.0
        %818 = vmatprep.subr.mxu0 0.0
        %819 = vmatpush1.msra.mxu0 0.0
        %820 = vmatprep.subr.mxu0 0.0
        %821 = vmatpush1.msra.mxu0 0.0
        %822 = vmatprep.subr.mxu0 0.0
        %823 = vmatpush1.msra.mxu0 0.0
        %824 = vmatprep.subr.mxu0 0.0
        %825 = vmatpush1.msra.mxu0 0.0
        %826 = vmatprep.subr.mxu0 0.0
        %827 = vmatpush1.msra.mxu0 0.0
        %828 = vmatprep.subr.mxu0 0.0
        %829 = vmatpush1.msra.mxu0 0.0
        %830 = vmatprep.subr.mxu0 0.0
        %831 = vmatpush1.msra.mxu0 0.0
        %832 = vmatprep.subr.mxu0 0.0
        %833 = vmatpush1.msra.mxu0 0.0
        %834 = vmatprep.subr.mxu0 0.0
        %835 = vmatpush1.msra.mxu0 0.0
        %836 = vmatprep.mubr.f32.mxu0 0.0
        %837 = vmatmul.mubr.f32.gmra.mrb[0].mxu0 %v765
        %v838 = vpop.f32.mrb[0].mxu0
        %v839 = vadd.f32 %v770, %v838
        %v840 = vpop.f32.mrb[0].mxu0
        %841 = vdwg.mxu0
        %v843 = vrot.slane %v839, 7
        %v845 = vsub.f32 %v839, %v843
        %v846 = vsub.f32 0.0, %v845
        %v847 = vmul.f32 %v846, 1.442695
        %v848 = vpow.pop %v847
        %v849 = vadd.f32 %v848, 1.0
        %v850 = vrcp.pop %v849
        %v851 = vsub.f32 1.0, %v850
        %v853 = vrot.slane %v851, 1
        %vm855 = vcmask 1040384
        %v856 = vsel %vm855, %v853, %v850
        %857 = vst [vmem:[%s215] sm:$0x3] %v856
        %s858 = sand.u32 %s137, 1
        %s859 = scalar_lea.sflag [#allocation3], %s858
        %s860 = sand.u32 %s137, 1
        %s861 = smul.addr %s860, 2
        %s862 = scalar_lea.vmem [#allocation2], %s861
        // Predicated region
        $region41: #{tpu_custom_call.1} parent=39 // pred_check
          %p863 = pneg %p147
        $region42: #{tpu_custom_call.1} parent=39 // pred_check_branch
          %865 = sbr.rel (%p863) target = $region44
        $region43: #{tpu_custom_call.1} parent=39 // pred_region
          %s867 = ssub.s32 32, 32
          %868 = vsyncadd %s859, %s867
          %s869 = smul.addr %s19, 32
          %s870 = scalar_lea.hbm %s5, %s869
          %s872 = sshll.u32 %s862, 4
          %s873 = int_to_ptr.vmem [resolvable:$true] %s872
          %875 = dma.vmem_to_hbm [thread:$0]  %s873, 32, %s870, %s859
        $region44: #{tpu_custom_call.1} parent=39 // pred_fallthru
          _
      $region40: #{tpu_custom_call.1} parent=5 // pred_fallthru
        _
      %p876 = scmp.le.s32.totalorder 2, %s14
      // Predicated region
      $region45: #{tpu_custom_call.1} parent=5 // pred_check
        %p877 = pneg %p876
      $region46: #{tpu_custom_call.1} parent=5 // pred_check_branch
        %879 = sbr.rel (%p877) target = $region48
      $region47: #{tpu_custom_call.1} parent=5 // pred_region
        %s880 = ssub.s32 %s14, 2
        // Predicated region
        $region49: #{tpu_custom_call.1} parent=47 // pred_check
          %p881 = pneg %p153
        $region50: #{tpu_custom_call.1} parent=47 // pred_check_branch
          %883 = sbr.rel (%p881) target = $region52
        $region51: #{tpu_custom_call.1} parent=47 // pred_region
          %s884 = sand.u32 %s138, 1
          %s885 = scalar_lea.sflag [#allocation3], %s884
          %s886 = sand.u32 %s138, 1
          %s887 = smul.addr %s886, 2
          %s888 = scalar_lea.vmem [#allocation2], %s887
          %889 = dma.done %s885, 32
        $region52: #{tpu_custom_call.1} parent=47 // pred_fallthru
          _
      $region48: #{tpu_custom_call.1} parent=5 // pred_fallthru
        _
    $region6: #{tpu_custom_call.1} parent=1 // loop_footer
      %s18 = sadd.s32 1, %s14
    $region7: #{tpu_custom_call.1} parent=1 // loop_footer_branch
      %13 = sbr.rel target = $region3
    $region8: #{tpu_custom_call.1} parent=1 // loop_exit
      _
    %890 = vsyncpa [#allocation3], 1
    %s891 = scalar_lea.sflag [#allocation3], 1
    %892 = vsyncpa %s891, 1

</llo_original>
